<compile_context>
chip_gen: v6e
topology: v6e:2x2x1
jax: 0.10.0
libtpu: 0.0.40
codegen_flags: <defaults>
</compile_context>

<pallas_src>
import functools

import jax
import jax.numpy as jnp
from jax.experimental import pallas as pl
from jax.experimental.pallas import tpu as pltpu


# ----------------------------- kernel body ---------------------------------


def _rmsnorm_kernel(x_ref, w_ref, o_ref, *, eps):
    # Hot path: square, mean-reduce over last (lane) axis, rsqrt, scale.
    x = x_ref[...].astype(jnp.float32)
    ms = jnp.mean(x * x, axis=-1, keepdims=True)      # cross-lane reduce -> XLU
    inv = jax.lax.rsqrt(ms + eps)                     # transcendental   -> EUP
    normed = (x * inv).astype(x_ref.dtype)            # .type_as(x) in torch
    w = w_ref[...]
    o_ref[...] = normed.astype(o_ref.dtype) * w.astype(o_ref.dtype)


# --------------------------- tiling heuristics ------------------------------

_VMEM_PIPELINE_BUDGET = 40 << 20   # conservative working-set budget (fits v7x 64 MiB)
_VMEM_LIMIT_BYTES = 48 << 20       # above scoped defaults (v5e 16 MiB, v6e/v7x 32 MiB)
_MAX_ROW_TILE = 1024


def _sublane_multiple(dtype) -> int:
    # Sub-32-bit dtypes pack along sublanes: 8 rows f32, 16 bf16, 32 int8/fp8.
    return max(8, 32 // max(1, jnp.dtype(dtype).itemsize))


def _round_up(n: int, m: int) -> int:
    return ((n + m - 1) // m) * m


def _choose_row_tile(rows: int, dim: int, x_dtype, out_dtype) -> int:
    in_b = jnp.dtype(x_dtype).itemsize
    out_b = jnp.dtype(out_dtype).itemsize
    # Per-row live bytes in VMEM: 2x double-buffered input + 2x double-buffered
    # output + 1x f32 intermediate materialized inside the kernel.
    per_row = dim * (2 * in_b + 2 * out_b + 4)
    tile = max(1, _VMEM_PIPELINE_BUDGET // per_row)
    sub = _sublane_multiple(x_dtype)
    tile = max(sub, (tile // sub) * sub)               # align to sublane packing
    tile = min(tile, _MAX_ROW_TILE)
    tile = min(tile, _round_up(rows, sub))             # never bigger than needed
    return tile


# ------------------------------- wrapper ------------------------------------


def rmsnorm(x, weight, eps: float = 1e-6, *, row_tile: int | None = None):
    """x: [..., dim], weight: [dim]."""
    dim = x.shape[-1]
    assert weight.shape == (dim,)
    out_dtype = jnp.result_type(x.dtype, weight.dtype)  # torch promotion of normed * weight

    lead_shape = x.shape[:-1]
    rows = 1
    for s in lead_shape:
        rows *= s
    x2d = x.reshape(rows, dim)
    w2d = weight.reshape(1, dim)

    if row_tile is None:
        tile = _choose_row_tile(rows, dim, x.dtype, out_dtype)
    else:
        sub = _sublane_multiple(x.dtype)
        tile = max(sub, _round_up(min(row_tile, _round_up(rows, sub)), sub))

    # TODO(synk): if dim < 128 in production, fold rows into the lane axis in the
    # wrapper to avoid masked partial stores; real Llama dims are lane-aligned.

    # Pad rows so the grid divides evenly. Zero rows normalize to zero (no NaN:
    # mean-square = 0 -> rsqrt(eps) * 0 = 0), then slice the padding back off.
    rows_padded = _round_up(rows, tile)
    if rows_padded != rows:
        x2d = jnp.pad(x2d, ((0, rows_padded - rows), (0, 0)))

    grid = (rows_padded // tile,)
    out = pl.pallas_call(
        functools.partial(_rmsnorm_kernel, eps=eps),
        out_shape=jax.ShapeDtypeStruct((rows_padded, dim), out_dtype),
        grid_spec=pltpu.PrefetchScalarGridSpec(
            num_scalar_prefetch=0,
            grid=grid,
            in_specs=[
                pl.BlockSpec((tile, dim), lambda i: (i, 0)),   # x row-tile
                pl.BlockSpec((1, dim), lambda i: (0, 0)),      # weight (broadcast)
            ],
            out_specs=pl.BlockSpec((tile, dim), lambda i: (i, 0)),
        ),
        compiler_params=pltpu.CompilerParams(
            dimension_semantics=("parallel",),          # shards across TCs on v7x
            vmem_limit_bytes=_VMEM_LIMIT_BYTES,
        ),
    )(x2d, w2d)
    if rows_padded != rows:
        out = out[:rows]
    return out.reshape(*lead_shape, dim)


# ------------------------------ reference -----------------------------------


def rmsnorm_ref(x, weight, eps: float = 1e-6):
    xf = x.astype(jnp.float32)
    inv = jax.lax.rsqrt(jnp.mean(xf * xf, axis=-1, keepdims=True) + eps)
    normed = (xf * inv).astype(x.dtype)
    return normed * weight


if __name__ == "__main__":
    key = jax.random.PRNGKey(0)

    # Case 1: f32, lane-dense dim, rows divide the tile.
    batch, seq, dim = 2, 8, 128
    x = jax.random.normal(key, (batch, seq, dim), dtype=jnp.float32)
    weight = jnp.ones((dim,), dtype=jnp.float32)   # nn.Parameter(torch.ones(dim))
    out = jax.block_until_ready(rmsnorm(x, weight, eps=1e-6))
    ref = rmsnorm_ref(x, weight, eps=1e-6)
    assert out.shape == ref.shape and out.dtype == ref.dtype
    assert jnp.allclose(out, ref, atol=1e-5, rtol=1e-5)

    # Case 2: bf16 input (sublane packing = 16) with a row count that does not
    # divide the tile — exercises the padded-tail path.
    batch2, seq2 = 2, 5
    x_bf16 = jax.random.normal(
        jax.random.PRNGKey(1), (batch2, seq2, dim), dtype=jnp.float32
    ).astype(jnp.bfloat16)
    w_bf16 = jnp.ones((dim,), dtype=jnp.bfloat16)
    out2 = jax.block_until_ready(rmsnorm(x_bf16, w_bf16, eps=1e-6))
    ref2 = rmsnorm_ref(x_bf16, w_bf16, eps=1e-6)
    assert out2.shape == ref2.shape and out2.dtype == ref2.dtype
    assert jnp.allclose(
        out2.astype(jnp.float32), ref2.astype(jnp.float32), atol=2e-2, rtol=2e-2
    )

    print("KERNEL_OK")
</pallas_src>

<mosaic_0001>
module attributes {stable_mosaic.version = 11 : i64} {
  func.func @_rmsnorm_kernel(%arg0: i32, %arg1: memref<16x128xf32, #tpu.memory_space<vmem>>, %arg2: memref<1x128xf32, #tpu.memory_space<vmem>>, %arg3: memref<16x128xf32, #tpu.memory_space<vmem>>) attributes {dimension_semantics = [#tpu.dimension_semantics<parallel>], iteration_bounds = array<i64: 1>, scalar_prefetch = 0 : i64, scratch_operands = 0 : i64, tpu.core_type = #tpu.core_type<tc>, window_params = [{transform_indices = @transform_0, window_bounds = array<i64: 16, 128>}, {pipeline_mode = #tpu.pipeline_mode<synchronous>, transform_indices = @transform_1, window_bounds = array<i64: 1, 128>}, {transform_indices = @transform_2, window_bounds = array<i64: 16, 128>}]} {
    %c0 = arith.constant 0 : index
    %c0_0 = arith.constant 0 : index
    %0 = vector.load %arg1[%c0, %c0_0] : memref<16x128xf32, #tpu.memory_space<vmem>>, vector<16x128xf32>
    %1 = arith.mulf %0, %0 : vector<16x128xf32>
    %cst = arith.constant dense<0.000000e+00> : vector<16xf32>
    %2 = vector.multi_reduction <add>, %1, %cst [1] : vector<16x128xf32> to vector<16xf32>
    %3 = vector.shape_cast %2 : vector<16xf32> to vector<16x1xf32>
    %cst_1 = arith.constant 1.280000e+02 : f32
    %4 = vector.broadcast %cst_1 : f32 to vector<16x1xf32>
    %5 = arith.divf %3, %4 : vector<16x1xf32>
    %cst_2 = arith.constant 9.99999997E-7 : f32
    %6 = vector.broadcast %cst_2 : f32 to vector<16x1xf32>
    %7 = arith.addf %5, %6 : vector<16x1xf32>
    %8 = math.rsqrt %7 : vector<16x1xf32>
    %9 = vector.broadcast %8 : vector<16x1xf32> to vector<16x128xf32>
    %10 = arith.mulf %0, %9 : vector<16x128xf32>
    %c0_3 = arith.constant 0 : index
    %c0_4 = arith.constant 0 : index
    %11 = vector.load %arg2[%c0_3, %c0_4] : memref<1x128xf32, #tpu.memory_space<vmem>>, vector<1x128xf32>
    %12 = vector.broadcast %11 : vector<1x128xf32> to vector<16x128xf32>
    %13 = arith.mulf %10, %12 : vector<16x128xf32>
    %c0_5 = arith.constant 0 : index
    %c0_6 = arith.constant 0 : index
    %14 = vector.load %arg3[%c0_5, %c0_6] : memref<16x128xf32, #tpu.memory_space<vmem>>, vector<16x128xf32>
    tpu.vector_store %arg3[%c0_5, %c0_6], %13 {strides = array<i32>} : memref<16x128xf32, #tpu.memory_space<vmem>>, vector<16x128xf32>,
    return
  }
  func.func @transform_0(%arg0: i32) -> (i32, i32) {
    %c0_i32 = arith.constant 0 : i32
    %c0_i32_0 = arith.constant 0 : i32
    return %arg0, %c0_i32 : i32, i32
  }
  func.func @transform_1(%arg0: i32) -> (i32, i32) {
    %c0_i32 = arith.constant 0 : i32
    %c0_i32_0 = arith.constant 0 : i32
    %c0_i32_1 = arith.constant 0 : i32
    return %c0_i32, %c0_i32_0 : i32, i32
  }
  func.func @transform_2(%arg0: i32) -> (i32, i32) {
    %c0_i32 = arith.constant 0 : i32
    %c0_i32_0 = arith.constant 0 : i32
    return %arg0, %c0_i32 : i32, i32
  }
}

</mosaic_0001>

<llo_original>
// kernel: tpu_custom_call.1
$region0: #{tpu_custom_call.1}
  #allocation0 [shape = 'u32[]', space=smem, size = 0x4, offset = 0x4, fixed_abs, tag = 'smem constant byte address 0x4 - core index']
  #allocation1 [shape = 'u32[144,128]{1,0:T(1,128)}', space=vmem, size = 0x12000, scoped, tag = 'internal scratch']
  %s0 = inlined_call_operand.hbm [shape: f32[16,128], index: 0, kind: input, shape index: {}]
  %s1 = inlined_call_operand.vmem [shape: f32[1,128], index: 1, kind: input, shape index: {}]
  %s2 = inlined_call_operand.hbm [shape: f32[16,128], index: 2, kind: output, shape index: {}]
  %s3 = sld [smem:[#allocation0]]
  $region22: #{tpu_custom_call.1} parent=0
    _
  %s5 = ssub.s32 1, %s3
  %s6 = scalar_select 0, %s5, %s3
  $region1: #{tpu_custom_call.1} parent=0
    #allocation2 [shape = 'u8[8192]{0}', space=vmem, size = 0x2000, scoped, tag = 'input window, operand 0, single buffered']
    #allocation3 [shape = 's32[1]{0}', space=sflag, size = 0x4, scoped, tag = 'scoped memory for tpu_custom_call.1']
    #allocation4 [shape = 's32[1]{0}', space=sflag, size = 0x4, scoped, tag = 'scoped memory for tpu_custom_call.1']
    #allocation5 [shape = 'u8[8192]{0}', space=vmem, size = 0x2000, scoped, tag = 'output window, operand 0, single buffered']
    %7 = vsyncpa [#allocation3], 0
    %8 = vsyncpa [#allocation4], 0
    // Predicated region
    $region2: #{tpu_custom_call.1} parent=1 // pred_check
      _
    $region3: #{tpu_custom_call.1} parent=1 // pred_check_branch
      %10 = sbr.rel (0) target = $region5
    $region4: #{tpu_custom_call.1} parent=1 // pred_region
      %s12 = ssub.s32 256, 256
      %13 = vsyncadd [#allocation3], %s12
      %s14 = sshll.u32 [#allocation2], 4
      %s15 = int_to_ptr.vmem [resolvable:$true] %s14
      %20 = dma.hbm_to_vmem [thread:$0]  %s0, 256, %s15, [#allocation3], 128, 128, 8
    $region5: #{tpu_custom_call.1} parent=1 // pred_fallthru
      _
    // Predicated region
    $region6: #{tpu_custom_call.1} parent=1 // pred_check
      _
    $region7: #{tpu_custom_call.1} parent=1 // pred_check_branch
      %22 = sbr.rel (0) target = $region9
    $region8: #{tpu_custom_call.1} parent=1 // pred_region
      _
    $region9: #{tpu_custom_call.1} parent=1 // pred_fallthru
      _
    // Predicated region
    $region10: #{tpu_custom_call.1} parent=1 // pred_check
      _
    $region11: #{tpu_custom_call.1} parent=1 // pred_check_branch
      %24 = sbr.rel (0) target = $region13
    $region12: #{tpu_custom_call.1} parent=1 // pred_region
      %25 = dma.done [#allocation3], 256
    $region13: #{tpu_custom_call.1} parent=1 // pred_fallthru
      _
    %v26 = vld [vmem:[#allocation2] sm:$0xff]
    %v27 = vld [vmem:[#allocation2 + $0x8] sm:$0xff]
    %v28 = vmul.f32 %v26, %v26
    %v29 = vmul.f32 %v27, %v27
    %30 = vadd.xlane.f32.xlu0 %v28
    %v31 = vpop.xlane.xlu0 %30
    %32 = vadd.xlane.f32.xlu0 %v29
    %v33 = vpop.xlane.xlu0 %32
    %v34 = vrcp.pop 128.0
    %v35 = vmul.f32 %v31, %v34
    %v36 = vmul.f32 %v33, %v34
    %v37 = vadd.f32 %v35, 1e-06
    %v38 = vadd.f32 %v36, 1e-06
    %v39 = vrsqrt.pop %v37
    %v40 = vrsqrt.pop %v38
    %v41 = vmul.f32 %v26, %v39
    %v42 = vmul.f32 %v27, %v40
    %v43 = vld [vmem:[%s1] sm:$0x1]
    %v45 = vlaneseq
    %v46 = vshrl.u32 %v45, 7
    %v47 = vsub.s32 0, %v46
    %v48 = vrot.slane %v43, %v47
    %v50 = vmul.f32 %v41, %v48
    %v51 = vmul.f32 %v42, %v48
    %52 = vst [vmem:[#allocation5] sm:$0xff] %v50
    %53 = vst [vmem:[#allocation5 + $0x8] sm:$0xff] %v51
    // Predicated region
    $region14: #{tpu_custom_call.1} parent=1 // pred_check
      _
    $region15: #{tpu_custom_call.1} parent=1 // pred_check_branch
      %55 = sbr.rel (0) target = $region17
    $region16: #{tpu_custom_call.1} parent=1 // pred_region
      %s57 = ssub.s32 256, 256
      %58 = vsyncadd [#allocation4], %s57
      %s59 = sshll.u32 [#allocation5], 4
      %s60 = int_to_ptr.vmem [resolvable:$true] %s59
      %65 = dma.vmem_to_hbm [thread:$0]  %s60, 256, %s2, [#allocation4], 128, 128, 8
    $region17: #{tpu_custom_call.1} parent=1 // pred_fallthru
      _
    // Predicated region
    $region18: #{tpu_custom_call.1} parent=1 // pred_check
      _
    $region19: #{tpu_custom_call.1} parent=1 // pred_check_branch
      %67 = sbr.rel (0) target = $region21
    $region20: #{tpu_custom_call.1} parent=1 // pred_region
      %68 = dma.done [#allocation4], 256
    $region21: #{tpu_custom_call.1} parent=1 // pred_fallthru
      _
    %69 = vsyncpa [#allocation3], 1
    %70 = vsyncpa [#allocation4], 1

</llo_original>
